<compile_context>
chip_gen: v5e
topology: v5e:2x2
jax: 0.10.0
libtpu: 0.0.40
codegen_flags: <defaults>
</compile_context>

<pallas_src>
import functools

import jax
import jax.numpy as jnp
from jax.experimental import pallas as pl
from jax.experimental.pallas import tpu as pltpu


def _adaptive_dropout_kernel(f_ref, wt_ref, w_ref, q_ref, mask_ref, p_ref):
    f = f_ref[...].astype(jnp.float32)      # (tN, D)
    w_t = wt_ref[...].astype(jnp.float32)   # (D, A)  == V2S_W.T (pre-transposed on host)
    w = w_ref[...].astype(jnp.float32)      # (A, D)

    # pre_attr = f @ V2S_W.T  -> (tN, A)
    pre_attr = jnp.dot(f, w_t, preferred_element_type=jnp.float32)

    # NOTE: the original F.normalize(pre_attr, p=2, dim=-1) is a positive per-row
    # scale; the per-row min/max rescale below is invariant under it, so it is
    # dropped exactly (only pathological ||row||_2 < 1e-12 rows would differ).

    # Compositive_p = pre_attr @ V2S_W -> (tN, D)
    comp = jnp.dot(pre_attr, w, preferred_element_type=jnp.float32)

    # per-row min/max rescale to [0, 1] (eps guard avoids NaN on a constant row)
    mx = jnp.max(comp, axis=-1, keepdims=True)
    mn = jnp.min(comp, axis=-1, keepdims=True)
    comp = (comp - mn) / jnp.maximum(mx - mn, jnp.float32(1e-12))

    # staircase quantization:
    #   p_new = 0.2 * (# stairs in {0.2, 0.4, 0.6, 0.8} strictly below comp)
    # which equals sum_i (heaviside(comp - s_i) - heaviside(comp - s_{i+1})) * s_i
    # with stairs [0.2, 0.4, 0.6, 0.8, 1.0 + 1e-6] since comp <= 1.0.
    m = ((comp > jnp.float32(0.2)).astype(jnp.float32)
         + (comp > jnp.float32(0.4)).astype(jnp.float32)
         + (comp > jnp.float32(0.6)).astype(jnp.float32)
         + (comp > jnp.float32(0.8)).astype(jnp.float32))
    p_new = jnp.float32(0.2) * m

    q = q_ref[...].astype(jnp.float32)
    mask_ref[...] = (q < p_new).astype(jnp.int8)
    p_ref[...] = p_new


@functools.partial(jax.jit, static_argnames=("row_tile",))
def adaptive_dropout(f, V2S_W, key, *, row_tile=512):
    """f: (N, D) f32, V2S_W: (A, D) f32 -> (mask bool, q f32, p_new f32), all (N, D)."""
    N, D = f.shape
    A = V2S_W.shape[0]

    # uniform draw (replaces torch.rand(...).cuda()); returned unchanged to the caller
    q = jax.random.uniform(key, (N, D), dtype=jnp.float32)

    # one host-side transpose of the tiny weight so both in-kernel matmuls contract
    # along the natural K dimension
    w_t = jnp.transpose(V2S_W)              # (D, A)

    tN = N if N <= row_tile else row_tile
    grid = (pl.cdiv(N, tN),)

    mask_i8, p_new = pl.pallas_call(
        _adaptive_dropout_kernel,
        out_shape=(
            jax.ShapeDtypeStruct((N, D), jnp.int8),     # mask (bool cast outside)
            jax.ShapeDtypeStruct((N, D), jnp.float32),  # p_new
        ),
        grid=grid,
        in_specs=[
            pl.BlockSpec((tN, D), lambda i: (i, 0)),    # f        (row-tiled)
            pl.BlockSpec((D, A), lambda i: (0, 0)),     # V2S_W.T  (resident)
            pl.BlockSpec((A, D), lambda i: (0, 0)),     # V2S_W    (resident)
            pl.BlockSpec((tN, D), lambda i: (i, 0)),    # q        (row-tiled)
        ],
        out_specs=(
            pl.BlockSpec((tN, D), lambda i: (i, 0)),    # mask
            pl.BlockSpec((tN, D), lambda i: (i, 0)),    # p_new
        ),
        compiler_params=pltpu.CompilerParams(
            dimension_semantics=("parallel",),          # shard rows across TCs (v7x)
            vmem_limit_bytes=32 * 1024 * 1024,          # fits v7x's 64 MiB physical VMEM
        ),
    )(f, w_t, V2S_W, q)

    return mask_i8.astype(jnp.bool_), q, p_new


def _reference(f, V2S_W, q):
    """Pure-JAX transcription of the original PyTorch forward (incl. normalize)."""
    pre = f @ V2S_W.T
    nrm = jnp.maximum(jnp.sqrt(jnp.sum(pre * pre, axis=-1, keepdims=True)), 1e-12)
    comp = (pre / nrm) @ V2S_W
    mx = comp.max(-1, keepdims=True)
    mn = comp.min(-1, keepdims=True)
    comp = (comp - mn) / (mx - mn)
    stairs = [0.2, 0.4, 0.6, 0.8, 1.0 + 1e-6]
    h = [(comp > s).astype(jnp.float32) for s in stairs]
    p = sum((h[i] - h[i + 1]) * jnp.float32(stairs[i]) for i in range(4))
    return (q < p), p


if __name__ == "__main__":
    # NOTE: the module's __init__ arg p=0.5 is unused in forward (kept for parity).
    key = jax.random.PRNGKey(0)
    kf, kw, kq = jax.random.split(key, 3)
    N, D, A = 8, 128, 16   # batch rows, visual feature dim, attribute dim
    f = jax.random.normal(kf, (N, D), dtype=jnp.float32)
    V2S_W = jax.random.normal(kw, (A, D), dtype=jnp.float32)  # deterministic "weight"

    mask, q, p_new = adaptive_dropout(f, V2S_W, kq)
    jax.block_until_ready((mask, q, p_new))

    # internal-consistency checks
    assert mask.shape == (N, D) and q.shape == (N, D) and p_new.shape == (N, D)
    assert bool(jnp.all(mask == (q < p_new)))
    stair_vals = jnp.asarray([0.0, 0.2, 0.4, 0.6, 0.8], dtype=jnp.float32)
    assert bool(jnp.all(jnp.min(jnp.abs(p_new[..., None] - stair_vals), axis=-1) < 1e-6))

    # compare against the faithful reference (boundary-exact FP ties are measure-zero
    # with random inputs; allow a vanishing mismatch fraction for robustness)
    mask_ref, p_ref = _reference(f, V2S_W, q)
    mismatch = jnp.mean((jnp.abs(p_new - p_ref) > 1e-6).astype(jnp.float32))
    assert float(mismatch) < 0.01, f"p_new mismatch fraction {float(mismatch)}"

    print("KERNEL_OK")
</pallas_src>

<mosaic_0001>
module attributes {stable_mosaic.version = 11 : i64} {
  func.func @_adaptive_dropout_kernel(%arg0: i32, %arg1: memref<8x128xf32, #tpu.memory_space<vmem>>, %arg2: memref<128x16xf32, #tpu.memory_space<vmem>>, %arg3: memref<16x128xf32, #tpu.memory_space<vmem>>, %arg4: memref<8x128xf32, #tpu.memory_space<vmem>>, %arg5: memref<8x128xi8, #tpu.memory_space<vmem>>, %arg6: memref<8x128xf32, #tpu.memory_space<vmem>>) attributes {dimension_semantics = [#tpu.dimension_semantics<parallel>], iteration_bounds = array<i64: 1>, scalar_prefetch = 0 : i64, scratch_operands = 0 : i64, tpu.core_type = #tpu.core_type<tc>, window_params = [{transform_indices = @transform_0, window_bounds = array<i64: 8, 128>}, {pipeline_mode = #tpu.pipeline_mode<synchronous>, transform_indices = @transform_1, window_bounds = array<i64: 128, 16>}, {pipeline_mode = #tpu.pipeline_mode<synchronous>, transform_indices = @transform_2, window_bounds = array<i64: 16, 128>}, {transform_indices = @transform_3, window_bounds = array<i64: 8, 128>}, {transform_indices = @transform_4, window_bounds = array<i64: 8, 128>}, {transform_indices = @transform_5, window_bounds = array<i64: 8, 128>}]} {
    %c0 = arith.constant 0 : index
    %c0_0 = arith.constant 0 : index
    %0 = vector.load %arg1[%c0, %c0_0] : memref<8x128xf32, #tpu.memory_space<vmem>>, vector<8x128xf32>
    %c0_1 = arith.constant 0 : index
    %c0_2 = arith.constant 0 : index
    %1 = vector.load %arg2[%c0_1, %c0_2] : memref<128x16xf32, #tpu.memory_space<vmem>>, vector<128x16xf32>
    %c0_3 = arith.constant 0 : index
    %c0_4 = arith.constant 0 : index
    %2 = vector.load %arg3[%c0_3, %c0_4] : memref<16x128xf32, #tpu.memory_space<vmem>>, vector<16x128xf32>
    %cst = arith.constant dense<0.000000e+00> : vector<8x16xf32>
    %3 = tpu.matmul %0, %1, %cst {dimension_numbers = #tpu.dot_dimension_numbers<[1], [0], [0], [1], [0, 0, 1, 1], [], []>} : vector<8x128xf32>, vector<128x16xf32>, vector<8x16xf32> -> vector<8x16xf32>
    %cst_5 = arith.constant dense<0.000000e+00> : vector<8x128xf32>
    %4 = tpu.matmul %3, %2, %cst_5 {dimension_numbers = #tpu.dot_dimension_numbers<[1], [0], [0], [1], [0, 0, 1, 1], [], []>} : vector<8x16xf32>, vector<16x128xf32>, vector<8x128xf32> -> vector<8x128xf32>
    %cst_6 = arith.constant dense<0xFF800000> : vector<8xf32>
    %5 = vector.multi_reduction <maximumf>, %4, %cst_6 [1] : vector<8x128xf32> to vector<8xf32>
    %6 = vector.shape_cast %5 : vector<8xf32> to vector<8x1xf32>
    %cst_7 = arith.constant dense<0x7F800000> : vector<8xf32>
    %7 = vector.multi_reduction <minimumf>, %4, %cst_7 [1] : vector<8x128xf32> to vector<8xf32>
    %8 = vector.shape_cast %7 : vector<8xf32> to vector<8x1xf32>
    %9 = vector.broadcast %8 : vector<8x1xf32> to vector<8x128xf32>
    %10 = arith.subf %4, %9 : vector<8x128xf32>
    %11 = arith.subf %6, %8 : vector<8x1xf32>
    %cst_8 = arith.constant 9.99999996E-13 : f32
    %12 = vector.broadcast %cst_8 : f32 to vector<8x1xf32>
    %13 = arith.maximumf %11, %12 : vector<8x1xf32>
    %14 = vector.broadcast %13 : vector<8x1xf32> to vector<8x128xf32>
    %15 = arith.divf %10, %14 : vector<8x128xf32>
    %cst_9 = arith.constant 2.000000e-01 : f32
    %16 = vector.broadcast %cst_9 : f32 to vector<8x128xf32>
    %17 = arith.cmpf ogt, %15, %16 : vector<8x128xf32>
    %18 = arith.extui %17 : vector<8x128xi1> to vector<8x128xi32>
    %19 = arith.sitofp %18 : vector<8x128xi32> to vector<8x128xf32>
    %cst_10 = arith.constant 4.000000e-01 : f32
    %20 = vector.broadcast %cst_10 : f32 to vector<8x128xf32>
    %21 = arith.cmpf ogt, %15, %20 : vector<8x128xf32>
    %22 = arith.extui %21 : vector<8x128xi1> to vector<8x128xi32>
    %23 = arith.sitofp %22 : vector<8x128xi32> to vector<8x128xf32>
    %24 = arith.addf %19, %23 : vector<8x128xf32>
    %cst_11 = arith.constant 6.000000e-01 : f32
    %25 = vector.broadcast %cst_11 : f32 to vector<8x128xf32>
    %26 = arith.cmpf ogt, %15, %25 : vector<8x128xf32>
    %27 = arith.extui %26 : vector<8x128xi1> to vector<8x128xi32>
    %28 = arith.sitofp %27 : vector<8x128xi32> to vector<8x128xf32>
    %29 = arith.addf %24, %28 : vector<8x128xf32>
    %cst_12 = arith.constant 8.000000e-01 : f32
    %30 = vector.broadcast %cst_12 : f32 to vector<8x128xf32>
    %31 = arith.cmpf ogt, %15, %30 : vector<8x128xf32>
    %32 = arith.extui %31 : vector<8x128xi1> to vector<8x128xi32>
    %33 = arith.sitofp %32 : vector<8x128xi32> to vector<8x128xf32>
    %34 = arith.addf %29, %33 : vector<8x128xf32>
    %cst_13 = arith.constant 2.000000e-01 : f32
    %35 = vector.broadcast %cst_13 : f32 to vector<8x128xf32>
    %36 = arith.mulf %35, %34 : vector<8x128xf32>
    %c0_14 = arith.constant 0 : index
    %c0_15 = arith.constant 0 : index
    %37 = vector.load %arg4[%c0_14, %c0_15] : memref<8x128xf32, #tpu.memory_space<vmem>>, vector<8x128xf32>
    %38 = arith.cmpf olt, %37, %36 : vector<8x128xf32>
    %39 = arith.extui %38 : vector<8x128xi1> to vector<8x128xi8>
    %c0_16 = arith.constant 0 : index
    %c0_17 = arith.constant 0 : index
    %40 = vector.load %arg5[%c0_16, %c0_17] : memref<8x128xi8, #tpu.memory_space<vmem>>, vector<8x128xi8>
    tpu.vector_store %arg5[%c0_16, %c0_17], %39 {strides = array<i32>} : memref<8x128xi8, #tpu.memory_space<vmem>>, vector<8x128xi8>,
    %c0_18 = arith.constant 0 : index
    %c0_19 = arith.constant 0 : index
    %41 = vector.load %arg6[%c0_18, %c0_19] : memref<8x128xf32, #tpu.memory_space<vmem>>, vector<8x128xf32>
    tpu.vector_store %arg6[%c0_18, %c0_19], %36 {strides = array<i32>} : memref<8x128xf32, #tpu.memory_space<vmem>>, vector<8x128xf32>,
    return
  }
  func.func @transform_0(%arg0: i32) -> (i32, i32) {
    %c0_i32 = arith.constant 0 : i32
    %c0_i32_0 = arith.constant 0 : i32
    return %arg0, %c0_i32 : i32, i32
  }
  func.func @transform_1(%arg0: i32) -> (i32, i32) {
    %c0_i32 = arith.constant 0 : i32
    %c0_i32_0 = arith.constant 0 : i32
    %c0_i32_1 = arith.constant 0 : i32
    return %c0_i32, %c0_i32_0 : i32, i32
  }
  func.func @transform_2(%arg0: i32) -> (i32, i32) {
    %c0_i32 = arith.constant 0 : i32
    %c0_i32_0 = arith.constant 0 : i32
    %c0_i32_1 = arith.constant 0 : i32
    return %c0_i32, %c0_i32_0 : i32, i32
  }
  func.func @transform_3(%arg0: i32) -> (i32, i32) {
    %c0_i32 = arith.constant 0 : i32
    %c0_i32_0 = arith.constant 0 : i32
    return %arg0, %c0_i32 : i32, i32
  }
  func.func @transform_4(%arg0: i32) -> (i32, i32) {
    %c0_i32 = arith.constant 0 : i32
    %c0_i32_0 = arith.constant 0 : i32
    return %arg0, %c0_i32 : i32, i32
  }
  func.func @transform_5(%arg0: i32) -> (i32, i32) {
    %c0_i32 = arith.constant 0 : i32
    %c0_i32_0 = arith.constant 0 : i32
    return %arg0, %c0_i32 : i32, i32
  }
}

</mosaic_0001>

<llo_original>
// kernel: adaptive_dropout.1
$region0: #{adaptive_dropout.1}
  #allocation0 [shape = 'u32[]', space=smem, size = 0x4, offset = 0x4, fixed_abs, tag = 'smem constant byte address 0x4 - core index']
  #allocation1 [shape = 'u32[72,128]{1,0:T(1,128)}', space=vmem, size = 0x9000, scoped, tag = 'internal scratch']
  %s0 = inlined_call_operand.vmem [shape: f32[8,128], index: 0, kind: input, shape index: {}]
  %s1 = inlined_call_operand.vmem [shape: f32[128,16], index: 1, kind: input, shape index: {}]
  %s2 = inlined_call_operand.vmem [shape: f32[16,128], index: 2, kind: input, shape index: {}]
  %s3 = inlined_call_operand.vmem [shape: f32[8,128], index: 3, kind: input, shape index: {}]
  %s4 = inlined_call_operand.vmem [shape: s8[8,128], index: 4, kind: output, shape index: {0}]
  %s5 = inlined_call_operand.hbm [shape: f32[8,128], index: 5, kind: output, shape index: {1}]
  %6 = xla_tuple %s4, %s5
  %s7 = sld [smem:[#allocation0]]
  $region34: #{adaptive_dropout.1} parent=0
    _
  %s9 = ssub.s32 1, %s7
  %s10 = scalar_select 0, %s9, %s7
  $region1: #{adaptive_dropout.1} parent=0
    #allocation2 [shape = 'u8[4096]{0}', space=vmem, size = 0x1000, scoped, tag = 'output window, operand 1, single buffered']
    #allocation3 [shape = 's32[1]{0}', space=sflag, size = 0x4, scoped, tag = 'scoped memory for adaptive_dropout.1']
    %11 = vsyncpa [#allocation3], 0
    // Predicated region
    $region2: #{adaptive_dropout.1} parent=1 // pred_check
      _
    $region3: #{adaptive_dropout.1} parent=1 // pred_check_branch
      %13 = sbr.rel (0) target = $region5
    $region4: #{adaptive_dropout.1} parent=1 // pred_region
      _
    $region5: #{adaptive_dropout.1} parent=1 // pred_fallthru
      _
    // Predicated region
    $region6: #{adaptive_dropout.1} parent=1 // pred_check
      _
    $region7: #{adaptive_dropout.1} parent=1 // pred_check_branch
      %15 = sbr.rel (0) target = $region9
    $region8: #{adaptive_dropout.1} parent=1 // pred_region
      _
    $region9: #{adaptive_dropout.1} parent=1 // pred_fallthru
      _
    // Predicated region
    $region10: #{adaptive_dropout.1} parent=1 // pred_check
      _
    $region11: #{adaptive_dropout.1} parent=1 // pred_check_branch
      %17 = sbr.rel (0) target = $region13
    $region12: #{adaptive_dropout.1} parent=1 // pred_region
      _
    $region13: #{adaptive_dropout.1} parent=1 // pred_fallthru
      _
    // Predicated region
    $region14: #{adaptive_dropout.1} parent=1 // pred_check
      _
    $region15: #{adaptive_dropout.1} parent=1 // pred_check_branch
      %19 = sbr.rel (0) target = $region17
    $region16: #{adaptive_dropout.1} parent=1 // pred_region
      _
    $region17: #{adaptive_dropout.1} parent=1 // pred_fallthru
      _
    %v22 = vld [vmem:[%s0] sm:$0xff]
    %v23 = vld [vmem:[%s1] sm:$0xff]
    %v24 = vld [vmem:[%s1 + $0x8] sm:$0xff]
    %v25 = vld [vmem:[%s1 + $0x10] sm:$0xff]
    %v26 = vld [vmem:[%s1 + $0x18] sm:$0xff]
    %v27 = vld [vmem:[%s1 + $0x20] sm:$0xff]
    %v28 = vld [vmem:[%s1 + $0x28] sm:$0xff]
    %v29 = vld [vmem:[%s1 + $0x30] sm:$0xff]
    %v30 = vld [vmem:[%s1 + $0x38] sm:$0xff]
    %v31 = vld [vmem:[%s1 + $0x40] sm:$0xff]
    %v32 = vld [vmem:[%s1 + $0x48] sm:$0xff]
    %v33 = vld [vmem:[%s1 + $0x50] sm:$0xff]
    %v34 = vld [vmem:[%s1 + $0x58] sm:$0xff]
    %v35 = vld [vmem:[%s1 + $0x60] sm:$0xff]
    %v36 = vld [vmem:[%s1 + $0x68] sm:$0xff]
    %v37 = vld [vmem:[%s1 + $0x70] sm:$0xff]
    %v38 = vld [vmem:[%s1 + $0x78] sm:$0xff]
    %v39 = vld [vmem:[%s2] sm:$0xff]
    %v40 = vld [vmem:[%s2 + $0x8] sm:$0xff]
    %41 = vmatpush.msra.mxu0 %v38
    %42 = vmatpush.msra.mxu0 %v37
    %43 = vmatpush.msra.mxu0 %v36
    %44 = vmatpush.msra.mxu0 %v35
    %45 = vmatpush.msra.mxu0 %v34
    %46 = vmatpush.msra.mxu0 %v33
    %47 = vmatpush.msra.mxu0 %v32
    %48 = vmatpush.msra.mxu0 %v31
    %49 = vmatpush.msra.mxu0 %v30
    %50 = vmatpush.msra.mxu0 %v29
    %51 = vmatpush.msra.mxu0 %v28
    %52 = vmatpush.msra.mxu0 %v27
    %53 = vmatpush.msra.mxu0 %v26
    %54 = vmatpush.msra.mxu0 %v25
    %55 = vmatpush.msra.mxu0 %v24
    %56 = vmatpush.msra.mxu0 %v23
    %57 = vmatmul.f32.gmra.mxu0 %v22
    %v58 = vpop.f32.mrf.mxu0
    %v59 = vadd.f32 0.0, %v58
    %60 = vdwg.mxu0
    %vm61 = vcmask 130048
    %v63 = vsel %vm61, %v59, 0
    %65 = vmatpush.msra.mxu0 0.0
    %66 = vmatpush.msra.mxu0 0.0
    %67 = vmatpush.msra.mxu0 0.0
    %68 = vmatpush.msra.mxu0 0.0
    %69 = vmatpush.msra.mxu0 0.0
    %70 = vmatpush.msra.mxu0 0.0
    %71 = vmatpush.msra.mxu0 0.0
    %72 = vmatpush.msra.mxu0 0.0
    %73 = vmatpush.msra.mxu0 0.0
    %74 = vmatpush.msra.mxu0 0.0
    %75 = vmatpush.msra.mxu0 0.0
    %76 = vmatpush.msra.mxu0 0.0
    %77 = vmatpush.msra.mxu0 0.0
    %78 = vmatpush.msra.mxu0 0.0
    %79 = vmatpush.msra.mxu0 %v40
    %80 = vmatpush.msra.mxu0 %v39
    %81 = vmatmul.f32.gmra.mxu0 %v63
    %v82 = vpop.f32.mrf.mxu0
    %v83 = vadd.f32 0.0, %v82
    %84 = vdwg.mxu0
    %85 = vmax.xlane.f32.xlu0 %v83
    %v86 = vpop.xlane.xlu0 %85
    %87 = vmin.xlane.f32.xlu0 %v83
    %v88 = vpop.xlane.xlu0 %87
    %v89 = vsub.f32 %v83, %v88
    %v90 = vsub.f32 %v86, %v88
    %v91 = vmax.f32 %v90, 1e-12
    %v92 = vrcp.pop %v91
    %v93 = vmul.f32 %v91, %v92
    %v94 = vsub.f32 1.0, %v93
    %v95 = vmul.f32 %v92, %v94
    %v96 = vadd.f32 %v92, %v95
    %vm97 = vweird.f32 %v91
    %vm98 = vweird.f32 %v92
    %vm99 = vmor %vm97, %vm98
    %v100 = vsel %vm99, %v92, %v96
    %v101 = vand.u32 2147483647, %v91
    %vm102 = vcmp.eq.f32.partialorder %v101, 8.507059e+37
    %v103 = vand.u32 %v91, 2147483648
    %v104 = vor.u32 1.1754944e-38, %v103
    %v105 = vsel %vm102, %v104, %v100
    %v106 = vmul.f32 %v89, %v105
    %vm107 = vcmp.gt.f32.partialorder %v106, 0.2
    %v108 = vsel %vm107, 1, 0
    %v109 = vcvt.s32.f32 %v108
    %vm110 = vcmp.gt.f32.partialorder %v106, 0.4
    %v111 = vsel %vm110, 1, 0
    %v112 = vcvt.s32.f32 %v111
    %v113 = vadd.f32 %v109, %v112
    %vm114 = vcmp.gt.f32.partialorder %v106, 0.6
    %v115 = vsel %vm114, 1, 0
    %v116 = vcvt.s32.f32 %v115
    %v117 = vadd.f32 %v113, %v116
    %vm118 = vcmp.gt.f32.partialorder %v106, 0.8
    %v119 = vsel %vm118, 1, 0
    %v120 = vcvt.s32.f32 %v119
    %v121 = vadd.f32 %v117, %v120
    %v122 = vmul.f32 %v121, 0.2
    %v123 = vld [vmem:[%s3] sm:$0xff]
    %vm124 = vcmp.lt.f32.partialorder %v123, %v122
    %vm125 = vmpackc.low %vm124, %vm124
    %v126 = vsel %vm125, 16711935, 0
    %v127 = vsel %vm125, 16711935, 0
    %v128 = vpack.c.b8 %v127, %v126
    %vm129 = vnez %v128
    %v130 = vsel %vm129, 16843009, 0
    %131 = vst [vmem:[%s4] sm:$0x3] %v130
    %132 = vst [vmem:[#allocation2] sm:$0xff] %v122
    // Predicated region
    $region18: #{adaptive_dropout.1} parent=1 // pred_check
      _
    $region19: #{adaptive_dropout.1} parent=1 // pred_check_branch
      %134 = sbr.rel (0) target = $region21
    $region20: #{adaptive_dropout.1} parent=1 // pred_region
      _
    $region21: #{adaptive_dropout.1} parent=1 // pred_fallthru
      _
    // Predicated region
    $region22: #{adaptive_dropout.1} parent=1 // pred_check
      _
    $region23: #{adaptive_dropout.1} parent=1 // pred_check_branch
      %136 = sbr.rel (0) target = $region25
    $region24: #{adaptive_dropout.1} parent=1 // pred_region
      %138 = vsyncadd [#allocation3], 0
      %s140 = sshll.u32 [#allocation2], 4
      %s141 = int_to_ptr.vmem [resolvable:$true] %s140
      %s142 = sshll.u32 %s5, 4
      %s143 = int_to_ptr.hbm [resolvable:$true] %s142
      %145 = dma.vmem_to_hbm [thread:$0]  %s141, 128, %s143, [#allocation3]
    $region25: #{adaptive_dropout.1} parent=1 // pred_fallthru
      _
    // Predicated region
    $region26: #{adaptive_dropout.1} parent=1 // pred_check
      _
    $region27: #{adaptive_dropout.1} parent=1 // pred_check_branch
      %147 = sbr.rel (0) target = $region29
    $region28: #{adaptive_dropout.1} parent=1 // pred_region
      _
    $region29: #{adaptive_dropout.1} parent=1 // pred_fallthru
      _
    // Predicated region
    $region30: #{adaptive_dropout.1} parent=1 // pred_check
      _
    $region31: #{adaptive_dropout.1} parent=1 // pred_check_branch
      %149 = sbr.rel (0) target = $region33
    $region32: #{adaptive_dropout.1} parent=1 // pred_region
      %151 = dma.done [#allocation3], 128
    $region33: #{adaptive_dropout.1} parent=1 // pred_fallthru
      _
    %152 = vsyncpa [#allocation3], 1

</llo_original>
